<compile_context>
chip_gen: v5e
topology: v5e:2x2
jax: 0.10.0
libtpu: 0.0.40
codegen_flags: <defaults>
</compile_context>

<pallas_src>
import jax
import jax.numpy as jnp
from jax import lax
from jax.experimental import pallas as pl
from jax.experimental.pallas import tpu as pltpu

N_FEATURE = 61
N_HIDDEN = 512
N_HIDDEN2 = 256
N_OUTPUT = 1
BN_EPS = 1e-5


def mlp_kernel(x_ref,
               w1_ref, g1_ref, be1_ref,
               w2_ref, g2_ref, be2_ref,
               w3_ref, b3_ref,
               o_ref):
    inv_b = jnp.float32(1.0 / x_ref.shape[0])   # static batch size

    def bn_relu(h, gamma, beta):
        # Train-mode BN (biased variance, eps=1e-5).  Centered two-pass variance for
        # numerical robustness, folded into a per-column scale/shift fused with ReLU.
        mu = jnp.sum(h, axis=0, keepdims=True) * inv_b
        d = h - mu
        var = jnp.sum(d * d, axis=0, keepdims=True) * inv_b
        scale = gamma * lax.rsqrt(var + BN_EPS)      # gamma / sqrt(var + eps)
        shift = beta - mu * scale
        return jnp.maximum(h * scale + shift, 0.0)   # 2 VALU ops/elem + max

    # x arrives as raw (B, 61) f32; cast to bf16 in-kernel (no wrapper pad/cast op).
    x = x_ref[...].astype(jnp.bfloat16)

    # int8 weight-only storage.  Per-output-column quant scale is exactly absorbed by
    # the train-mode BatchNorm that follows, so no dequant multiply is needed — just
    # widen to bf16 for the MXU (explicit i8 -> f32 -> bf16 widen keeps the cast on
    # well-supported lowering paths).  Linear biases are dropped: BN mean-subtraction
    # cancels them exactly.
    w1 = w1_ref[...].astype(jnp.float32).astype(jnp.bfloat16)        # (61, 512)
    h1 = jnp.dot(x, w1, preferred_element_type=jnp.float32)          # f32 accumulate
    h1 = bn_relu(h1, g1_ref[...], be1_ref[...])

    w2 = w2_ref[...].astype(jnp.float32).astype(jnp.bfloat16)        # (512, 256)
    h2 = jnp.dot(h1.astype(jnp.bfloat16), w2, preferred_element_type=jnp.float32)
    h2 = bn_relu(h2, g2_ref[...], be2_ref[...])

    # Output head 256 -> 1: XLU lane-reduce instead of an almost-empty MXU tile.
    z = jnp.sum(h2 * w3_ref[...], axis=-1, keepdims=True) + b3_ref[...]
    # Exact sigmoid via a single EUP tanh (no approx-reciprocal error in the output).
    o_ref[...] = 0.5 + 0.5 * jnp.tanh(0.5 * z)


def net_forward(x, kparams):
    """x: (B, 61) f32; kparams: kernel-ready params from prepare_params (int8 weights)."""
    B = x.shape[0]
    bytes_accessed = int(x.size) * x.dtype.itemsize \
        + sum(int(p.size) * p.dtype.itemsize for p in kparams) \
        + B * N_OUTPUT * 4
    cost = pl.CostEstimate(
        flops=2 * B * (N_FEATURE * N_HIDDEN + N_HIDDEN * N_HIDDEN2 + N_HIDDEN2 * N_OUTPUT),
        transcendentals=N_HIDDEN + N_HIDDEN2 + B,     # rsqrt per BN column + tanh per row
        bytes_accessed=int(bytes_accessed),
    )
    vmem = pl.BlockSpec(memory_space=pltpu.MemorySpace.VMEM)
    return pl.pallas_call(
        mlp_kernel,
        out_shape=jax.ShapeDtypeStruct((B, N_OUTPUT), jnp.float32),
        in_specs=[vmem] * 9,
        out_specs=vmem,
        cost_estimate=cost,
    )(x, *kparams)


def init_params(key):
    """PyTorch-like f32 parameters. Linear weights stored (in, out); row vectors (1, out)."""
    ks = jax.random.split(key, 8)

    def lin(kw, kb, n_in, n_out):
        bound = 1.0 / jnp.sqrt(jnp.float32(n_in))
        w = jax.random.uniform(kw, (n_in, n_out), jnp.float32, -bound, bound)
        b = jax.random.uniform(kb, (1, n_out), jnp.float32, -bound, bound)
        return w, b

    w1, b1 = lin(ks[0], ks[1], N_FEATURE, N_HIDDEN)
    w2, b2 = lin(ks[2], ks[3], N_HIDDEN, N_HIDDEN2)
    w3, b3 = lin(ks[4], ks[5], N_HIDDEN2, N_OUTPUT)

    # BatchNorm affine params; perturb gamma so the scale path is exercised.
    g1 = 1.0 + 0.1 * jax.random.normal(ks[6], (1, N_HIDDEN), jnp.float32)
    be1 = jnp.zeros((1, N_HIDDEN), jnp.float32)
    g2 = 1.0 + 0.1 * jax.random.normal(ks[7], (1, N_HIDDEN2), jnp.float32)
    be2 = jnp.zeros((1, N_HIDDEN2), jnp.float32)

    return (w1, b1, g1, be1, w2, b2, g2, be2, w3, b3)


def quantize_per_column(w):
    """Symmetric per-output-column int8 weight quant; returns (int8 weights, dequantized f32)."""
    amax = jnp.max(jnp.abs(w), axis=0, keepdims=True)
    s = jnp.maximum(amax, 1e-8) / 127.0
    w_q = jnp.clip(jnp.round(w / s), -127, 127).astype(jnp.int8)
    w_eff = w_q.astype(jnp.float32) * s
    return w_q, w_eff


def prepare_params(params):
    """One-time (outside the per-call hot path): int8-quantize w1/w2, reshape head params.

    Linear biases b1/b2 are intentionally dropped: train-mode BN cancels them exactly.
    The per-column quant scales are not passed either: BN absorbs them exactly.
    """
    (w1, b1, g1, be1, w2, b2, g2, be2, w3, b3) = params
    w1_q, _ = quantize_per_column(w1)
    w2_q, _ = quantize_per_column(w2)
    return (w1_q, g1, be1,
            w2_q, g2, be2,
            w3.reshape(1, N_HIDDEN2), b3.reshape(1, N_OUTPUT))


# -------------------- references --------------------
def _bn_ref(h, gamma, beta):
    mu = jnp.mean(h, axis=0, keepdims=True)
    var = jnp.mean((h - mu) * (h - mu), axis=0, keepdims=True)
    return (h - mu) * lax.rsqrt(var + BN_EPS) * gamma + beta


def reference_forward_f32(x, params):
    """Exact f32 forward of the PyTorch module (train-mode BN), biases included."""
    (w1, b1, g1, be1, w2, b2, g2, be2, w3, b3) = params
    h1 = jnp.maximum(_bn_ref(x @ w1 + b1, g1, be1), 0.0)
    h2 = jnp.maximum(_bn_ref(h1 @ w2 + b2, g2, be2), 0.0)
    return jax.nn.sigmoid(h2 @ w3 + b3)


def reference_forward_mirror(x, params):
    """Mirrors the kernel numerics: un-scaled int8 weights in bf16 (BN absorbs the scale),
    bf16 matmul inputs with f32 accumulation, no pre-BN bias, exact sigmoid."""
    (w1, b1, g1, be1, w2, b2, g2, be2, w3, b3) = params
    w1_q, _ = quantize_per_column(w1)
    w2_q, _ = quantize_per_column(w2)
    h1 = jnp.dot(x.astype(jnp.bfloat16), w1_q.astype(jnp.bfloat16),
                 preferred_element_type=jnp.float32)
    h1 = jnp.maximum(_bn_ref(h1, g1, be1), 0.0)
    h2 = jnp.dot(h1.astype(jnp.bfloat16), w2_q.astype(jnp.bfloat16),
                 preferred_element_type=jnp.float32)
    h2 = jnp.maximum(_bn_ref(h2, g2, be2), 0.0)
    return jax.nn.sigmoid(h2 @ w3 + b3)


if __name__ == "__main__":
    key = jax.random.PRNGKey(0)
    kx, kp = jax.random.split(key)

    B = 8  # small batch (>1 so BatchNorm batch stats are well-defined)
    x = jax.random.normal(kx, (B, N_FEATURE), jnp.float32)
    params = init_params(kp)
    kparams = prepare_params(params)           # once, outside the per-call hot path

    fwd = jax.jit(net_forward)
    out = jax.block_until_ready(fwd(x, kparams))
    assert out.shape == (B, N_OUTPUT)

    # Tight check vs. a reference that mirrors the kernel's quantized-bf16 numerics
    # (remaining deltas: MXU vs XLA accumulation order, fused BN scale/shift form).
    ref_mirror = reference_forward_mirror(x, params)
    assert jnp.allclose(out, ref_mirror, atol=1e-2, rtol=0.0), \
        float(jnp.max(jnp.abs(out - ref_mirror)))

    # Loose semantic check vs. the exact f32 module forward (int8 + bf16 error bound).
    ref_f32 = reference_forward_f32(x, params)
    assert jnp.allclose(out, ref_f32, atol=3e-2, rtol=0.0), \
        float(jnp.max(jnp.abs(out - ref_f32)))

    print("KERNEL_OK")
</pallas_src>

<mosaic_0001>
module attributes {stable_mosaic.version = 11 : i64} {
  func.func @mlp_kernel(%arg0: memref<8x61xf32, #tpu.memory_space<vmem>>, %arg1: memref<61x512xi8, #tpu.memory_space<vmem>>, %arg2: memref<1x512xf32, #tpu.memory_space<vmem>>, %arg3: memref<1x512xf32, #tpu.memory_space<vmem>>, %arg4: memref<512x256xi8, #tpu.memory_space<vmem>>, %arg5: memref<1x256xf32, #tpu.memory_space<vmem>>, %arg6: memref<1x256xf32, #tpu.memory_space<vmem>>, %arg7: memref<1x256xf32, #tpu.memory_space<vmem>>, %arg8: memref<1x1xf32, #tpu.memory_space<vmem>>, %arg9: memref<8x1xf32, #tpu.memory_space<vmem>>) attributes {dimension_semantics = [], scalar_prefetch = 0 : i64, scratch_operands = 0 : i64, tpu.core_type = #tpu.core_type<tc>} {
    %c0 = arith.constant 0 : index
    %c0_0 = arith.constant 0 : index
    %0 = vector.load %arg0[%c0, %c0_0] : memref<8x61xf32, #tpu.memory_space<vmem>>, vector<8x61xf32>
    %1 = arith.truncf %0 : vector<8x61xf32> to vector<8x61xbf16>
    %c0_1 = arith.constant 0 : index
    %c0_2 = arith.constant 0 : index
    %2 = vector.load %arg1[%c0_1, %c0_2] : memref<61x512xi8, #tpu.memory_space<vmem>>, vector<61x512xi8>
    %3 = arith.sitofp %2 : vector<61x512xi8> to vector<61x512xf32>
    %4 = arith.truncf %3 : vector<61x512xf32> to vector<61x512xbf16>
    %cst = arith.constant dense<0.000000e+00> : vector<8x512xf32>
    %5 = tpu.matmul %1, %4, %cst {dimension_numbers = #tpu.dot_dimension_numbers<[1], [0], [0], [1], [0, 0, 1, 1], [], []>} : vector<8x61xbf16>, vector<61x512xbf16>, vector<8x512xf32> -> vector<8x512xf32>
    %c0_3 = arith.constant 0 : index
    %c0_4 = arith.constant 0 : index
    %6 = vector.load %arg2[%c0_3, %c0_4] : memref<1x512xf32, #tpu.memory_space<vmem>>, vector<1x512xf32>
    %c0_5 = arith.constant 0 : index
    %c0_6 = arith.constant 0 : index
    %7 = vector.load %arg3[%c0_5, %c0_6] : memref<1x512xf32, #tpu.memory_space<vmem>>, vector<1x512xf32>
    %cst_7 = arith.constant dense<0.000000e+00> : vector<512xf32>
    %8 = vector.multi_reduction <add>, %5, %cst_7 [0] : vector<8x512xf32> to vector<512xf32>
    %9 = vector.shape_cast %8 : vector<512xf32> to vector<1x512xf32>
    %cst_8 = arith.constant 1.250000e-01 : f32
    %10 = vector.broadcast %cst_8 : f32 to vector<1x512xf32>
    %11 = arith.mulf %9, %10 : vector<1x512xf32>
    %12 = vector.broadcast %11 : vector<1x512xf32> to vector<8x512xf32>
    %13 = arith.subf %5, %12 : vector<8x512xf32>
    %14 = arith.mulf %13, %13 : vector<8x512xf32>
    %cst_9 = arith.constant dense<0.000000e+00> : vector<512xf32>
    %15 = vector.multi_reduction <add>, %14, %cst_9 [0] : vector<8x512xf32> to vector<512xf32>
    %16 = vector.shape_cast %15 : vector<512xf32> to vector<1x512xf32>
    %cst_10 = arith.constant 1.250000e-01 : f32
    %17 = vector.broadcast %cst_10 : f32 to vector<1x512xf32>
    %18 = arith.mulf %16, %17 : vector<1x512xf32>
    %cst_11 = arith.constant 9.99999974E-6 : f32
    %19 = vector.broadcast %cst_11 : f32 to vector<1x512xf32>
    %20 = arith.addf %18, %19 : vector<1x512xf32>
    %21 = math.rsqrt %20 : vector<1x512xf32>
    %22 = arith.mulf %6, %21 : vector<1x512xf32>
    %23 = arith.mulf %11, %22 : vector<1x512xf32>
    %24 = arith.subf %7, %23 : vector<1x512xf32>
    %25 = vector.broadcast %22 : vector<1x512xf32> to vector<8x512xf32>
    %26 = arith.mulf %5, %25 : vector<8x512xf32>
    %27 = vector.broadcast %24 : vector<1x512xf32> to vector<8x512xf32>
    %28 = arith.addf %26, %27 : vector<8x512xf32>
    %cst_12 = arith.constant 0.000000e+00 : f32
    %29 = vector.broadcast %cst_12 : f32 to vector<8x512xf32>
    %30 = arith.maximumf %28, %29 : vector<8x512xf32>
    %c0_13 = arith.constant 0 : index
    %c0_14 = arith.constant 0 : index
    %31 = vector.load %arg4[%c0_13, %c0_14] : memref<512x256xi8, #tpu.memory_space<vmem>>, vector<512x256xi8>
    %32 = arith.sitofp %31 : vector<512x256xi8> to vector<512x256xf32>
    %33 = arith.truncf %32 : vector<512x256xf32> to vector<512x256xbf16>
    %34 = arith.truncf %30 : vector<8x512xf32> to vector<8x512xbf16>
    %cst_15 = arith.constant dense<0.000000e+00> : vector<8x256xf32>
    %35 = tpu.matmul %34, %33, %cst_15 {dimension_numbers = #tpu.dot_dimension_numbers<[1], [0], [0], [1], [0, 0, 1, 1], [], []>} : vector<8x512xbf16>, vector<512x256xbf16>, vector<8x256xf32> -> vector<8x256xf32>
    %c0_16 = arith.constant 0 : index
    %c0_17 = arith.constant 0 : index
    %36 = vector.load %arg5[%c0_16, %c0_17] : memref<1x256xf32, #tpu.memory_space<vmem>>, vector<1x256xf32>
    %c0_18 = arith.constant 0 : index
    %c0_19 = arith.constant 0 : index
    %37 = vector.load %arg6[%c0_18, %c0_19] : memref<1x256xf32, #tpu.memory_space<vmem>>, vector<1x256xf32>
    %cst_20 = arith.constant dense<0.000000e+00> : vector<256xf32>
    %38 = vector.multi_reduction <add>, %35, %cst_20 [0] : vector<8x256xf32> to vector<256xf32>
    %39 = vector.shape_cast %38 : vector<256xf32> to vector<1x256xf32>
    %cst_21 = arith.constant 1.250000e-01 : f32
    %40 = vector.broadcast %cst_21 : f32 to vector<1x256xf32>
    %41 = arith.mulf %39, %40 : vector<1x256xf32>
    %42 = vector.broadcast %41 : vector<1x256xf32> to vector<8x256xf32>
    %43 = arith.subf %35, %42 : vector<8x256xf32>
    %44 = arith.mulf %43, %43 : vector<8x256xf32>
    %cst_22 = arith.constant dense<0.000000e+00> : vector<256xf32>
    %45 = vector.multi_reduction <add>, %44, %cst_22 [0] : vector<8x256xf32> to vector<256xf32>
    %46 = vector.shape_cast %45 : vector<256xf32> to vector<1x256xf32>
    %cst_23 = arith.constant 1.250000e-01 : f32
    %47 = vector.broadcast %cst_23 : f32 to vector<1x256xf32>
    %48 = arith.mulf %46, %47 : vector<1x256xf32>
    %cst_24 = arith.constant 9.99999974E-6 : f32
    %49 = vector.broadcast %cst_24 : f32 to vector<1x256xf32>
    %50 = arith.addf %48, %49 : vector<1x256xf32>
    %51 = math.rsqrt %50 : vector<1x256xf32>
    %52 = arith.mulf %36, %51 : vector<1x256xf32>
    %53 = arith.mulf %41, %52 : vector<1x256xf32>
    %54 = arith.subf %37, %53 : vector<1x256xf32>
    %55 = vector.broadcast %52 : vector<1x256xf32> to vector<8x256xf32>
    %56 = arith.mulf %35, %55 : vector<8x256xf32>
    %57 = vector.broadcast %54 : vector<1x256xf32> to vector<8x256xf32>
    %58 = arith.addf %56, %57 : vector<8x256xf32>
    %cst_25 = arith.constant 0.000000e+00 : f32
    %59 = vector.broadcast %cst_25 : f32 to vector<8x256xf32>
    %60 = arith.maximumf %58, %59 : vector<8x256xf32>
    %c0_26 = arith.constant 0 : index
    %c0_27 = arith.constant 0 : index
    %61 = vector.load %arg7[%c0_26, %c0_27] : memref<1x256xf32, #tpu.memory_space<vmem>>, vector<1x256xf32>
    %62 = vector.broadcast %61 : vector<1x256xf32> to vector<8x256xf32>
    %63 = arith.mulf %60, %62 : vector<8x256xf32>
    %cst_28 = arith.constant dense<0.000000e+00> : vector<8xf32>
    %64 = vector.multi_reduction <add>, %63, %cst_28 [1] : vector<8x256xf32> to vector<8xf32>
    %65 = vector.shape_cast %64 : vector<8xf32> to vector<8x1xf32>
    %c0_29 = arith.constant 0 : index
    %c0_30 = arith.constant 0 : index
    %66 = vector.load %arg8[%c0_29, %c0_30] : memref<1x1xf32, #tpu.memory_space<vmem>>, vector<1x1xf32>
    %67 = vector.broadcast %66 : vector<1x1xf32> to vector<8x1xf32>
    %68 = arith.addf %65, %67 : vector<8x1xf32>
    %cst_31 = arith.constant 5.000000e-01 : f32
    %69 = vector.broadcast %cst_31 : f32 to vector<8x1xf32>
    %70 = arith.mulf %69, %68 : vector<8x1xf32>
    %71 = math.tanh %70 : vector<8x1xf32>
    %cst_32 = arith.constant 5.000000e-01 : f32
    %72 = vector.broadcast %cst_32 : f32 to vector<8x1xf32>
    %73 = arith.mulf %72, %71 : vector<8x1xf32>
    %cst_33 = arith.constant 5.000000e-01 : f32
    %74 = vector.broadcast %cst_33 : f32 to vector<8x1xf32>
    %75 = arith.addf %74, %73 : vector<8x1xf32>
    %c0_34 = arith.constant 0 : index
    %c0_35 = arith.constant 0 : index
    %76 = vector.load %arg9[%c0_34, %c0_35] : memref<8x1xf32, #tpu.memory_space<vmem>>, vector<8x1xf32>
    tpu.vector_store %arg9[%c0_34, %c0_35], %75 {strides = array<i32>} : memref<8x1xf32, #tpu.memory_space<vmem>>, vector<8x1xf32>,
    return
  }
}

</mosaic_0001>

<llo_original>
// kernel: net_forward.1
$region0: #{net_forward.1}
  #allocation0 [shape = 'u32[]', space=smem, size = 0x4, offset = 0x4, fixed_abs, tag = 'smem constant byte address 0x4 - core index']
  #allocation1 [shape = 'u32[72,128]{1,0:T(1,128)}', space=vmem, size = 0x9000, scoped, tag = 'internal scratch']
  #allocation2 [shape = 'f32[1,1]{1,0:T(1,128)S(1)}', space=vmem, size = 0x200, scoped, tag = 'scoped memory for net_forward.1']
  %s0 = inlined_call_operand.hbm [shape: f32[8,61], index: 0, kind: input, shape index: {}]
  %s1 = inlined_call_operand.hbm [shape: s8[61,512], index: 1, kind: input, shape index: {}]
  %s2 = inlined_call_operand.hbm [shape: f32[1,512], index: 2, kind: input, shape index: {}]
  %s3 = inlined_call_operand.vmem [shape: f32[1,512], index: 3, kind: input, shape index: {}]
  %s4 = inlined_call_operand.hbm [shape: s8[512,256], index: 4, kind: input, shape index: {}]
  %s5 = inlined_call_operand.vmem [shape: f32[1,256], index: 5, kind: input, shape index: {}]
  %s6 = inlined_call_operand.hbm [shape: f32[1,256], index: 6, kind: input, shape index: {}]
  %s7 = inlined_call_operand.vmem [shape: f32[1,256], index: 7, kind: input, shape index: {}]
  %s8 = inlined_call_operand.<no memory space> [shape: f32[1,1], index: 8, kind: input, shape index: {}]
  %s9 = inlined_call_operand.vmem [shape: f32[8,1], index: 9, kind: output, shape index: {}]
  %s10 = sld [smem:[#allocation0]]
  $region66: #{net_forward.1} parent=0
    _
  %s12 = ssub.s32 1, %s10
  %s13 = scalar_select 0, %s12, %s10
  %v14 = vstv %s8
  %15 = vst [vmem:[#allocation2] sm:$0x1] %v14
  $region1: #{net_forward.1} parent=0
    #allocation3 [shape = 'u8[4096]{0}', space=vmem, size = 0x1000, scoped, tag = 'input window, operand 0, single buffered']
    #allocation4 [shape = 's32[1]{0}', space=sflag, size = 0x4, scoped, tag = 'scoped memory for net_forward.1']
    #allocation5 [shape = 'u8[32768]{0}', space=vmem, size = 0x8000, scoped, tag = 'input window, operand 1, single buffered']
    #allocation6 [shape = 's32[1]{0}', space=sflag, size = 0x4, scoped, tag = 'scoped memory for net_forward.1']
    #allocation7 [shape = 'u8[2048]{0}', space=vmem, size = 0x800, scoped, tag = 'input window, operand 2, single buffered']
    #allocation8 [shape = 'u8[131072]{0}', space=vmem, size = 0x20000, scoped, tag = 'input window, operand 4, single buffered']
    #allocation9 [shape = 's32[1]{0}', space=sflag, size = 0x4, scoped, tag = 'scoped memory for net_forward.1']
    #allocation10 [shape = 'u8[1024]{0}', space=vmem, size = 0x400, scoped, tag = 'input window, operand 6, single buffered']
    %16 = vsyncpa [#allocation4], 0
    %17 = vsyncpa [#allocation6], 0
    %18 = vsyncpa [#allocation9], 0
    // Predicated region
    $region2: #{net_forward.1} parent=1 // pred_check
      _
    $region3: #{net_forward.1} parent=1 // pred_check_branch
      %20 = sbr.rel (0) target = $region5
    $region4: #{net_forward.1} parent=1 // pred_region
      %22 = vsyncadd [#allocation4], 0
      %s24 = sshll.u32 %s0, 4
      %s25 = int_to_ptr.hbm [resolvable:$true] %s24
      %s26 = sshll.u32 [#allocation3], 4
      %s27 = int_to_ptr.vmem [resolvable:$true] %s26
      %29 = dma.hbm_to_vmem [thread:$0]  %s25, 128, %s27, [#allocation4]
    $region5: #{net_forward.1} parent=1 // pred_fallthru
      _
    // Predicated region
    $region6: #{net_forward.1} parent=1 // pred_check
      _
    $region7: #{net_forward.1} parent=1 // pred_check_branch
      %31 = sbr.rel (0) target = $region9
    $region8: #{net_forward.1} parent=1 // pred_region
      %33 = vsyncadd [#allocation6], 0
      %s34 = sshll.u32 %s1, 4
      %s35 = int_to_ptr.hbm [resolvable:$true] %s34
      %s36 = sshll.u32 [#allocation5], 4
      %s37 = int_to_ptr.vmem [resolvable:$true] %s36
      %42 = dma.hbm_to_vmem [thread:$0]  %s35, 1024, %s37, [#allocation6], 128, 128, 8
    $region9: #{net_forward.1} parent=1 // pred_fallthru
      _
    // Predicated region
    $region10: #{net_forward.1} parent=1 // pred_check
      _
    $region11: #{net_forward.1} parent=1 // pred_check_branch
      %44 = sbr.rel (0) target = $region13
    $region12: #{net_forward.1} parent=1 // pred_region
      %46 = vsyncadd [#allocation6], 0
      %s48 = sshll.u32 %s2, 4
      %s49 = int_to_ptr.hbm [resolvable:$true] %s48
      %s50 = sshll.u32 [#allocation7], 4
      %s51 = int_to_ptr.vmem [resolvable:$true] %s50
      %53 = dma.hbm_to_vmem [thread:$0]  %s49, 64, %s51, [#allocation6]
    $region13: #{net_forward.1} parent=1 // pred_fallthru
      _
    // Predicated region
    $region14: #{net_forward.1} parent=1 // pred_check
      _
    $region15: #{net_forward.1} parent=1 // pred_check_branch
      %55 = sbr.rel (0) target = $region17
    $region16: #{net_forward.1} parent=1 // pred_region
      _
    $region17: #{net_forward.1} parent=1 // pred_fallthru
      _
    // Predicated region
    $region18: #{net_forward.1} parent=1 // pred_check
      _
    $region19: #{net_forward.1} parent=1 // pred_check_branch
      %57 = sbr.rel (0) target = $region21
    $region20: #{net_forward.1} parent=1 // pred_region
      %59 = vsyncadd [#allocation9], 0
      %s60 = sshll.u32 %s4, 4
      %s61 = int_to_ptr.hbm [resolvable:$true] %s60
      %s62 = sshll.u32 [#allocation8], 4
      %s63 = int_to_ptr.vmem [resolvable:$true] %s62
      %68 = dma.hbm_to_vmem [thread:$0]  %s61, 4096, %s63, [#allocation9], 256, 256, 16
    $region21: #{net_forward.1} parent=1 // pred_fallthru
      _
    // Predicated region
    $region22: #{net_forward.1} parent=1 // pred_check
      _
    $region23: #{net_forward.1} parent=1 // pred_check_branch
      %70 = sbr.rel (0) target = $region25
    $region24: #{net_forward.1} parent=1 // pred_region
      _
    $region25: #{net_forward.1} parent=1 // pred_fallthru
      _
    // Predicated region
    $region26: #{net_forward.1} parent=1 // pred_check
      _
    $region27: #{net_forward.1} parent=1 // pred_check_branch
      %72 = sbr.rel (0) target = $region29
    $region28: #{net_forward.1} parent=1 // pred_region
      %74 = vsyncadd [#allocation9], 0
      %s76 = sshll.u32 %s6, 4
      %s77 = int_to_ptr.hbm [resolvable:$true] %s76
      %s78 = sshll.u32 [#allocation10], 4
      %s79 = int_to_ptr.vmem [resolvable:$true] %s78
      %81 = dma.hbm_to_vmem [thread:$0]  %s77, 32, %s79, [#allocation9]
    $region29: #{net_forward.1} parent=1 // pred_fallthru
      _
    // Predicated region
    $region30: #{net_forward.1} parent=1 // pred_check
      _
    $region31: #{net_forward.1} parent=1 // pred_check_branch
      %83 = sbr.rel (0) target = $region33
    $region32: #{net_forward.1} parent=1 // pred_region
      _
    $region33: #{net_forward.1} parent=1 // pred_fallthru
      _
    // Predicated region
    $region34: #{net_forward.1} parent=1 // pred_check
      _
    $region35: #{net_forward.1} parent=1 // pred_check_branch
      %85 = sbr.rel (0) target = $region37
    $region36: #{net_forward.1} parent=1 // pred_region
      _
    $region37: #{net_forward.1} parent=1 // pred_fallthru
      _
    // Predicated region
    $region38: #{net_forward.1} parent=1 // pred_check
      _
    $region39: #{net_forward.1} parent=1 // pred_check_branch
      %87 = sbr.rel (0) target = $region41
    $region40: #{net_forward.1} parent=1 // pred_region
      %89 = dma.done [#allocation4], 128
    $region41: #{net_forward.1} parent=1 // pred_fallthru
      _
    // Predicated region
    $region42: #{net_forward.1} parent=1 // pred_check
      _
    $region43: #{net_forward.1} parent=1 // pred_check_branch
      %91 = sbr.rel (0) target = $region45
    $region44: #{net_forward.1} parent=1 // pred_region
      %93 = dma.done [#allocation6], 1024
    $region45: #{net_forward.1} parent=1 // pred_fallthru
      _
    // Predicated region
    $region46: #{net_forward.1} parent=1 // pred_check
      _
    $region47: #{net_forward.1} parent=1 // pred_check_branch
      %95 = sbr.rel (0) target = $region49
    $region48: #{net_forward.1} parent=1 // pred_region
      %97 = dma.done [#allocation6], 64
    $region49: #{net_forward.1} parent=1 // pred_fallthru
      _
    // Predicated region
    $region50: #{net_forward.1} parent=1 // pred_check
      _
    $region51: #{net_forward.1} parent=1 // pred_check_branch
      %99 = sbr.rel (0) target = $region53
    $region52: #{net_forward.1} parent=1 // pred_region
      %101 = dma.done [#allocation9], 4096
    $region53: #{net_forward.1} parent=1 // pred_fallthru
      _
    // Predicated region
    $region54: #{net_forward.1} parent=1 // pred_check
      _
    $region55: #{net_forward.1} parent=1 // pred_check_branch
      %103 = sbr.rel (0) target = $region57
    $region56: #{net_forward.1} parent=1 // pred_region
      %105 = dma.done [#allocation9], 32
    $region57: #{net_forward.1} parent=1 // pred_fallthru
      _
    %v107 = vld [vmem:[#allocation3] sm:$0xff]
    %v108 = vpack.c.bf16 %v107, %v107
    %v109 = vld [vmem:[#allocation5] sm:$0xff]
    %v110 = vld [vmem:[#allocation5 + $0x8] sm:$0xff]
    %v111 = vld [vmem:[#allocation5 + $0x10] sm:$0xff]
    %v112 = vld [vmem:[#allocation5 + $0x18] sm:$0xff]
    %v113 = vld [vmem:[#allocation5 + $0x20] sm:$0xff]
    %v114 = vld [vmem:[#allocation5 + $0x28] sm:$0xff]
    %v115 = vld [vmem:[#allocation5 + $0x30] sm:$0xff]
    %v116 = vld [vmem:[#allocation5 + $0x38] sm:$0xff]
    %v117 = vunpack.c.0.s8 %v109
    %v118 = vunpack.c.1.s8 %v109
    %v119 = vunpack.c.2.s8 %v109
    %v120 = vunpack.c.3.s8 %v109
    %v121 = vunpack.c.0.s8 %v110
    %v122 = vunpack.c.1.s8 %v110
    %v123 = vunpack.c.2.s8 %v110
    %v124 = vunpack.c.3.s8 %v110
    %v125 = vunpack.c.0.s8 %v111
    %v126 = vunpack.c.1.s8 %v111
    %v127 = vunpack.c.2.s8 %v111
    %v128 = vunpack.c.3.s8 %v111
    %v129 = vunpack.c.0.s8 %v112
    %v130 = vunpack.c.1.s8 %v112
    %v131 = vunpack.c.2.s8 %v112
    %v132 = vunpack.c.3.s8 %v112
    %v133 = vunpack.c.0.s8 %v113
    %v134 = vunpack.c.1.s8 %v113
    %v135 = vunpack.c.2.s8 %v113
    %v136 = vunpack.c.3.s8 %v113
    %v137 = vunpack.c.0.s8 %v114
    %v138 = vunpack.c.1.s8 %v114
    %v139 = vunpack.c.2.s8 %v114
    %v140 = vunpack.c.3.s8 %v114
    %v141 = vunpack.c.0.s8 %v115
    %v142 = vunpack.c.1.s8 %v115
    %v143 = vunpack.c.2.s8 %v115
    %v144 = vunpack.c.3.s8 %v115
    %v145 = vunpack.c.0.s8 %v116
    %v146 = vunpack.c.1.s8 %v116
    %v147 = vunpack.c.2.s8 %v116
    %v148 = vunpack.c.3.s8 %v116
    %v149 = vcvt.s32.f32 %v117
    %v150 = vcvt.s32.f32 %v118
    %v151 = vcvt.s32.f32 %v119
    %v152 = vcvt.s32.f32 %v120
    %v153 = vcvt.s32.f32 %v121
    %v154 = vcvt.s32.f32 %v122
    %v155 = vcvt.s32.f32 %v123
    %v156 = vcvt.s32.f32 %v124
    %v157 = vcvt.s32.f32 %v125
    %v158 = vcvt.s32.f32 %v126
    %v159 = vcvt.s32.f32 %v127
    %v160 = vcvt.s32.f32 %v128
    %v161 = vcvt.s32.f32 %v129
    %v162 = vcvt.s32.f32 %v130
    %v163 = vcvt.s32.f32 %v131
    %v164 = vcvt.s32.f32 %v132
    %v165 = vcvt.s32.f32 %v133
    %v166 = vcvt.s32.f32 %v134
    %v167 = vcvt.s32.f32 %v135
    %v168 = vcvt.s32.f32 %v136
    %v169 = vcvt.s32.f32 %v137
    %v170 = vcvt.s32.f32 %v138
    %v171 = vcvt.s32.f32 %v139
    %v172 = vcvt.s32.f32 %v140
    %v173 = vcvt.s32.f32 %v141
    %v174 = vcvt.s32.f32 %v142
    %v175 = vcvt.s32.f32 %v143
    %v176 = vcvt.s32.f32 %v144
    %v177 = vcvt.s32.f32 %v145
    %v178 = vcvt.s32.f32 %v146
    %v179 = vcvt.s32.f32 %v147
    %v180 = vcvt.s32.f32 %v148
    %v181 = vpack.c.bf16 %v153, %v149
    %v182 = vpack.c.bf16 %v154, %v150
    %v183 = vpack.c.bf16 %v155, %v151
    %v184 = vpack.c.bf16 %v156, %v152
    %v185 = vpack.c.bf16 %v161, %v157
    %v186 = vpack.c.bf16 %v162, %v158
    %v187 = vpack.c.bf16 %v163, %v159
    %v188 = vpack.c.bf16 %v164, %v160
    %v189 = vpack.c.bf16 %v169, %v165
    %v190 = vpack.c.bf16 %v170, %v166
    %v191 = vpack.c.bf16 %v171, %v167
    %v192 = vpack.c.bf16 %v172, %v168
    %v193 = vpack.c.bf16 %v177, %v173
    %v194 = vpack.c.bf16 %v178, %v174
    %v195 = vpack.c.bf16 %v179, %v175
    %v196 = vpack.c.bf16 %v180, %v176
    %vm197 = vcmask 498688
    %v199 = vsel %vm197, %v108, 0
    %vm201 = vcmask 1045504
    %vm202 = vcmask 1046528
    %v203 = vsel %vm201, 4294967295, 65535
    %v204 = vsel %vm202, %v203, 0
    %v206 = vand.u32 %v193, %v204
    %v209 = vand.u32 %v194, %v204
    %v212 = vand.u32 %v195, %v204
    %v215 = vand.u32 %v196, %v204
    %217 = vmatpush.bf16.msra.mxu0 0
    %218 = vmatpush.bf16.msra.mxu0 0
    %219 = vmatpush.bf16.msra.mxu0 0
    %220 = vmatpush.bf16.msra.mxu0 0
    %221 = vmatpush.bf16.msra.mxu0 %v206
    %222 = vmatpush.bf16.msra.mxu0 %v189
    %223 = vmatpush.bf16.msra.mxu0 %v185
    %224 = vmatpush.bf16.msra.mxu0 %v181
    %225 = vmatmul.bf16.gmra.mxu0 %v199
    %v226 = vpop.f32.mrf.mxu0
    %v227 = vadd.f32 0.0, %v226
    %v228 = vpop.f32.mrf.mxu0
    %229 = vdwg.mxu0
    %230 = vmatpush.bf16.msra.mxu0 0
    %231 = vmatpush.bf16.msra.mxu0 0
    %232 = vmatpush.bf16.msra.mxu0 0
    %233 = vmatpush.bf16.msra.mxu0 0
    %234 = vmatpush.bf16.msra.mxu0 %v209
    %235 = vmatpush.bf16.msra.mxu0 %v190
    %236 = vmatpush.bf16.msra.mxu0 %v186
    %237 = vmatpush.bf16.msra.mxu0 %v182
    %238 = vmatmul.bf16.gmra.mxu0 %v199
    %v239 = vpop.f32.mrf.mxu0
    %v240 = vadd.f32 0.0, %v239
    %v241 = vpop.f32.mrf.mxu0
    %242 = vdwg.mxu0
    %243 = vmatpush.bf16.msra.mxu0 0
    %244 = vmatpush.bf16.msra.mxu0 0
    %245 = vmatpush.bf16.msra.mxu0 0
    %246 = vmatpush.bf16.msra.mxu0 0
    %247 = vmatpush.bf16.msra.mxu0 %v212
    %248 = vmatpush.bf16.msra.mxu0 %v191
    %249 = vmatpush.bf16.msra.mxu0 %v187
    %250 = vmatpush.bf16.msra.mxu0 %v183
    %251 = vmatmul.bf16.gmra.mxu0 %v199
    %v252 = vpop.f32.mrf.mxu0
    %v253 = vadd.f32 0.0, %v252
    %v254 = vpop.f32.mrf.mxu0
    %255 = vdwg.mxu0
    %256 = vmatpush.bf16.msra.mxu0 0
    %257 = vmatpush.bf16.msra.mxu0 0
    %258 = vmatpush.bf16.msra.mxu0 0
    %259 = vmatpush.bf16.msra.mxu0 0
    %260 = vmatpush.bf16.msra.mxu0 %v215
    %261 = vmatpush.bf16.msra.mxu0 %v192
    %262 = vmatpush.bf16.msra.mxu0 %v188
    %263 = vmatpush.bf16.msra.mxu0 %v184
    %264 = vmatmul.bf16.gmra.mxu0 %v199
    %v265 = vpop.f32.mrf.mxu0
    %v266 = vadd.f32 0.0, %v265
    %v267 = vpop.f32.mrf.mxu0
    %268 = vdwg.mxu0
    %v269 = vld [vmem:[#allocation7] sm:$0xf]
    %v270 = vld [vmem:[%s3] sm:$0xf]
    %v271 = vrot.slane %v227, 4
    %v272 = vadd.f32 %v227, %v271
    %v273 = vrot.slane %v272, 2
    %v274 = vadd.f32 %v272, %v273
    %v275 = vrot.slane %v274, 1
    %v276 = vadd.f32 %v274, %v275
    %v277 = vrot.slane %v240, 4
    %v278 = vadd.f32 %v240, %v277
    %v279 = vrot.slane %v278, 2
    %v280 = vadd.f32 %v278, %v279
    %v281 = vrot.slane %v280, 1
    %v282 = vadd.f32 %v280, %v281
    %v283 = vrot.slane %v253, 4
    %v284 = vadd.f32 %v253, %v283
    %v285 = vrot.slane %v284, 2
    %v286 = vadd.f32 %v284, %v285
    %v287 = vrot.slane %v286, 1
    %v288 = vadd.f32 %v286, %v287
    %v289 = vrot.slane %v266, 4
    %v290 = vadd.f32 %v266, %v289
    %v291 = vrot.slane %v290, 2
    %v292 = vadd.f32 %v290, %v291
    %v293 = vrot.slane %v292, 1
    %v294 = vadd.f32 %v292, %v293
    %v295 = vmul.f32 %v276, 0.125
    %v296 = vmul.f32 %v282, 0.125
    %v297 = vmul.f32 %v288, 0.125
    %v298 = vmul.f32 %v294, 0.125
    %v299 = vsub.f32 %v227, %v295
    %v300 = vsub.f32 %v240, %v296
    %v301 = vsub.f32 %v253, %v297
    %v302 = vsub.f32 %v266, %v298
    %v303 = vmul.f32 %v299, %v299
    %v304 = vmul.f32 %v300, %v300
    %v305 = vmul.f32 %v301, %v301
    %v306 = vmul.f32 %v302, %v302
    %v307 = vrot.slane %v303, 4
    %v308 = vadd.f32 %v303, %v307
    %v309 = vrot.slane %v308, 2
    %v310 = vadd.f32 %v308, %v309
    %v311 = vrot.slane %v310, 1
    %v312 = vadd.f32 %v310, %v311
    %v313 = vrot.slane %v304, 4
    %v314 = vadd.f32 %v304, %v313
    %v315 = vrot.slane %v314, 2
    %v316 = vadd.f32 %v314, %v315
    %v317 = vrot.slane %v316, 1
    %v318 = vadd.f32 %v316, %v317
    %v319 = vrot.slane %v305, 4
    %v320 = vadd.f32 %v305, %v319
    %v321 = vrot.slane %v320, 2
    %v322 = vadd.f32 %v320, %v321
    %v323 = vrot.slane %v322, 1
    %v324 = vadd.f32 %v322, %v323
    %v325 = vrot.slane %v306, 4
    %v326 = vadd.f32 %v306, %v325
    %v327 = vrot.slane %v326, 2
    %v328 = vadd.f32 %v326, %v327
    %v329 = vrot.slane %v328, 1
    %v330 = vadd.f32 %v328, %v329
    %v331 = vmul.f32 %v312, 0.125
    %v332 = vmul.f32 %v318, 0.125
    %v333 = vmul.f32 %v324, 0.125
    %v334 = vmul.f32 %v330, 0.125
    %v335 = vadd.f32 %v331, 1e-05
    %v336 = vadd.f32 %v332, 1e-05
    %v337 = vadd.f32 %v333, 1e-05
    %v338 = vadd.f32 %v334, 1e-05
    %v339 = vrsqrt.pop %v335
    %v340 = vmul.f32 %v339, %v335
    %v341 = vmul.f32 %v340, %v339
    %v342 = vmul.f32 0.5, %v341
    %v343 = vsub.f32 1.5, %v342
    %v344 = vmul.f32 %v339, %v343
    %vm345 = vweird.f32 %v335
    %vm346 = vweird.f32 %v339
    %vm347 = vmor %vm345, %vm346
    %v348 = vsel %vm347, %v339, %v344
    %v349 = vrsqrt.pop %v336
    %v350 = vmul.f32 %v349, %v336
    %v351 = vmul.f32 %v350, %v349
    %v352 = vmul.f32 0.5, %v351
    %v353 = vsub.f32 1.5, %v352
    %v354 = vmul.f32 %v349, %v353
    %vm355 = vweird.f32 %v336
    %vm356 = vweird.f32 %v349
    %vm357 = vmor %vm355, %vm356
    %v358 = vsel %vm357, %v349, %v354
    %v359 = vrsqrt.pop %v337
    %v360 = vmul.f32 %v359, %v337
    %v361 = vmul.f32 %v360, %v359
    %v362 = vmul.f32 0.5, %v361
    %v363 = vsub.f32 1.5, %v362
    %v364 = vmul.f32 %v359, %v363
    %vm365 = vweird.f32 %v337
    %vm366 = vweird.f32 %v359
    %vm367 = vmor %vm365, %vm366
    %v368 = vsel %vm367, %v359, %v364
    %v369 = vrsqrt.pop %v338
    %v370 = vmul.f32 %v369, %v338
    %v371 = vmul.f32 %v370, %v369
    %v372 = vmul.f32 0.5, %v371
    %v373 = vsub.f32 1.5, %v372
    %v374 = vmul.f32 %v369, %v373
    %vm375 = vweird.f32 %v338
    %vm376 = vweird.f32 %v369
    %vm377 = vmor %vm375, %vm376
    %v378 = vsel %vm377, %v369, %v374
    %v383 = vrot.slane %v358, 7
    %v384 = vrot.slane %v368, 6
    %v385 = vrot.slane %v378, 5
    %vm386 = vcmask 1040384
    %v387 = vsel %vm386, %v348, %v383
    %vm388 = vcmask 1042434
    %v389 = vsel %vm388, %v384, %v385
    %vm390 = vcmask 1041408
    %v391 = vsel %vm390, %v387, %v389
    %v393 = vmul.f32 %v269, %v391
    %v395 = vperm.slane %v393, 0
    %v396 = vperm.slane %v393, 1
    %v397 = vperm.slane %v393, 2
    %v398 = vperm.slane %v393, 3
    %v403 = vmul.f32 %v295, %v395
    %v404 = vmul.f32 %v296, %v396
    %v405 = vmul.f32 %v297, %v397
    %v406 = vmul.f32 %v298, %v398
    %v411 = vrot.slane %v404, 7
    %v412 = vrot.slane %v405, 6
    %v413 = vrot.slane %v406, 5
    %v414 = vsel %vm386, %v403, %v411
    %v415 = vsel %vm388, %v412, %v413
    %v416 = vsel %vm390, %v414, %v415
    %v418 = vsub.f32 %v270, %v416
    %v419 = vmul.f32 %v227, %v395
    %v420 = vmul.f32 %v240, %v396
    %v421 = vmul.f32 %v253, %v397
    %v422 = vmul.f32 %v266, %v398
    %v424 = vperm.slane %v418, 0
    %v425 = vperm.slane %v418, 1
    %v426 = vperm.slane %v418, 2
    %v427 = vperm.slane %v418, 3
    %v432 = vadd.f32 %v419, %v424
    %v433 = vadd.f32 %v420, %v425
    %v434 = vadd.f32 %v421, %v426
    %v435 = vadd.f32 %v422, %v427
    %v436 = vmax.f32 %v432, 0.0
    %v437 = vmax.f32 %v433, 0.0
    %v438 = vmax.f32 %v434, 0.0
    %v439 = vmax.f32 %v435, 0.0
    %v440 = vld [vmem:[#allocation8] sm:$0xff]
    %v441 = vld [vmem:[#allocation8 + $0x8] sm:$0xff]
    %v442 = vld [vmem:[#allocation8 + $0x10] sm:$0xff]
    %v443 = vld [vmem:[#allocation8 + $0x18] sm:$0xff]
    %v444 = vld [vmem:[#allocation8 + $0x20] sm:$0xff]
    %v445 = vld [vmem:[#allocation8 + $0x28] sm:$0xff]
    %v446 = vld [vmem:[#allocation8 + $0x30] sm:$0xff]
    %v447 = vld [vmem:[#allocation8 + $0x38] sm:$0xff]
    %v448 = vld [vmem:[#allocation8 + $0x40] sm:$0xff]
    %v449 = vld [vmem:[#allocation8 + $0x48] sm:$0xff]
    %v450 = vld [vmem:[#allocation8 + $0x50] sm:$0xff]
    %v451 = vld [vmem:[#allocation8 + $0x58] sm:$0xff]
    %v452 = vld [vmem:[#allocation8 + $0x60] sm:$0xff]
    %v453 = vld [vmem:[#allocation8 + $0x68] sm:$0xff]
    %v454 = vld [vmem:[#allocation8 + $0x70] sm:$0xff]
    %v455 = vld [vmem:[#allocation8 + $0x78] sm:$0xff]
    %v456 = vld [vmem:[#allocation8 + $0x80] sm:$0xff]
    %v457 = vld [vmem:[#allocation8 + $0x88] sm:$0xff]
    %v458 = vld [vmem:[#allocation8 + $0x90] sm:$0xff]
    %v459 = vld [vmem:[#allocation8 + $0x98] sm:$0xff]
    %v460 = vld [vmem:[#allocation8 + $0xa0] sm:$0xff]
    %v461 = vld [vmem:[#allocation8 + $0xa8] sm:$0xff]
    %v462 = vld [vmem:[#allocation8 + $0xb0] sm:$0xff]
    %v463 = vld [vmem:[#allocation8 + $0xb8] sm:$0xff]
    %v464 = vld [vmem:[#allocation8 + $0xc0] sm:$0xff]
    %v465 = vld [vmem:[#allocation8 + $0xc8] sm:$0xff]
    %v466 = vld [vmem:[#allocation8 + $0xd0] sm:$0xff]
    %v467 = vld [vmem:[#allocation8 + $0xd8] sm:$0xff]
    %v468 = vld [vmem:[#allocation8 + $0xe0] sm:$0xff]
    %v469 = vld [vmem:[#allocation8 + $0xe8] sm:$0xff]
    %v470 = vld [vmem:[#allocation8 + $0xf0] sm:$0xff]
    %v471 = vld [vmem:[#allocation8 + $0xf8] sm:$0xff]
    %v472 = vunpack.c.0.s8 %v440
    %v473 = vunpack.c.0.s8 %v441
    %v474 = vunpack.c.1.s8 %v440
    %v475 = vunpack.c.1.s8 %v441
    %v476 = vunpack.c.2.s8 %v440
    %v477 = vunpack.c.2.s8 %v441
    %v478 = vunpack.c.3.s8 %v440
    %v479 = vunpack.c.3.s8 %v441
    %v480 = vunpack.c.0.s8 %v442
    %v481 = vunpack.c.0.s8 %v443
    %v482 = vunpack.c.1.s8 %v442
    %v483 = vunpack.c.1.s8 %v443
    %v484 = vunpack.c.2.s8 %v442
    %v485 = vunpack.c.2.s8 %v443
    %v486 = vunpack.c.3.s8 %v442
    %v487 = vunpack.c.3.s8 %v443
    %v488 = vunpack.c.0.s8 %v444
    %v489 = vunpack.c.0.s8 %v445
    %v490 = vunpack.c.1.s8 %v444
    %v491 = vunpack.c.1.s8 %v445
    %v492 = vunpack.c.2.s8 %v444
    %v493 = vunpack.c.2.s8 %v445
    %v494 = vunpack.c.3.s8 %v444
    %v495 = vunpack.c.3.s8 %v445
    %v496 = vunpack.c.0.s8 %v446
    %v497 = vunpack.c.0.s8 %v447
    %v498 = vunpack.c.1.s8 %v446
    %v499 = vunpack.c.1.s8 %v447
    %v500 = vunpack.c.2.s8 %v446
    %v501 = vunpack.c.2.s8 %v447
    %v502 = vunpack.c.3.s8 %v446
    %v503 = vunpack.c.3.s8 %v447
    %v504 = vunpack.c.0.s8 %v448
    %v505 = vunpack.c.0.s8 %v449
    %v506 = vunpack.c.1.s8 %v448
    %v507 = vunpack.c.1.s8 %v449
    %v508 = vunpack.c.2.s8 %v448
    %v509 = vunpack.c.2.s8 %v449
    %v510 = vunpack.c.3.s8 %v448
    %v511 = vunpack.c.3.s8 %v449
    %v512 = vunpack.c.0.s8 %v450
    %v513 = vunpack.c.0.s8 %v451
    %v514 = vunpack.c.1.s8 %v450
    %v515 = vunpack.c.1.s8 %v451
    %v516 = vunpack.c.2.s8 %v450
    %v517 = vunpack.c.2.s8 %v451
    %v518 = vunpack.c.3.s8 %v450
    %v519 = vunpack.c.3.s8 %v451
    %v520 = vunpack.c.0.s8 %v452
    %v521 = vunpack.c.0.s8 %v453
    %v522 = vunpack.c.1.s8 %v452
    %v523 = vunpack.c.1.s8 %v453
    %v524 = vunpack.c.2.s8 %v452
    %v525 = vunpack.c.2.s8 %v453
    %v526 = vunpack.c.3.s8 %v452
    %v527 = vunpack.c.3.s8 %v453
    %v528 = vunpack.c.0.s8 %v454
    %v529 = vunpack.c.0.s8 %v455
    %v530 = vunpack.c.1.s8 %v454
    %v531 = vunpack.c.1.s8 %v455
    %v532 = vunpack.c.2.s8 %v454
    %v533 = vunpack.c.2.s8 %v455
    %v534 = vunpack.c.3.s8 %v454
    %v535 = vunpack.c.3.s8 %v455
    %v536 = vunpack.c.0.s8 %v456
    %v537 = vunpack.c.0.s8 %v457
    %v538 = vunpack.c.1.s8 %v456
    %v539 = vunpack.c.1.s8 %v457
    %v540 = vunpack.c.2.s8 %v456
    %v541 = vunpack.c.2.s8 %v457
    %v542 = vunpack.c.3.s8 %v456
    %v543 = vunpack.c.3.s8 %v457
    %v544 = vunpack.c.0.s8 %v458
    %v545 = vunpack.c.0.s8 %v459
    %v546 = vunpack.c.1.s8 %v458
    %v547 = vunpack.c.1.s8 %v459
    %v548 = vunpack.c.2.s8 %v458
    %v549 = vunpack.c.2.s8 %v459
    %v550 = vunpack.c.3.s8 %v458
    %v551 = vunpack.c.3.s8 %v459
    %v552 = vunpack.c.0.s8 %v460
    %v553 = vunpack.c.0.s8 %v461
    %v554 = vunpack.c.1.s8 %v460
    %v555 = vunpack.c.1.s8 %v461
    %v556 = vunpack.c.2.s8 %v460
    %v557 = vunpack.c.2.s8 %v461
    %v558 = vunpack.c.3.s8 %v460
    %v559 = vunpack.c.3.s8 %v461
    %v560 = vunpack.c.0.s8 %v462
    %v561 = vunpack.c.0.s8 %v463
    %v562 = vunpack.c.1.s8 %v462
    %v563 = vunpack.c.1.s8 %v463
    %v564 = vunpack.c.2.s8 %v462
    %v565 = vunpack.c.2.s8 %v463
    %v566 = vunpack.c.3.s8 %v462
    %v567 = vunpack.c.3.s8 %v463
    %v568 = vunpack.c.0.s8 %v464
    %v569 = vunpack.c.0.s8 %v465
    %v570 = vunpack.c.1.s8 %v464
    %v571 = vunpack.c.1.s8 %v465
    %v572 = vunpack.c.2.s8 %v464
    %v573 = vunpack.c.2.s8 %v465
    %v574 = vunpack.c.3.s8 %v464
    %v575 = vunpack.c.3.s8 %v465
    %v576 = vunpack.c.0.s8 %v466
    %v577 = vunpack.c.0.s8 %v467
    %v578 = vunpack.c.1.s8 %v466
    %v579 = vunpack.c.1.s8 %v467
    %v580 = vunpack.c.2.s8 %v466
    %v581 = vunpack.c.2.s8 %v467
    %v582 = vunpack.c.3.s8 %v466
    %v583 = vunpack.c.3.s8 %v467
    %v584 = vunpack.c.0.s8 %v468
    %v585 = vunpack.c.0.s8 %v469
    %v586 = vunpack.c.1.s8 %v468
    %v587 = vunpack.c.1.s8 %v469
    %v588 = vunpack.c.2.s8 %v468
    %v589 = vunpack.c.2.s8 %v469
    %v590 = vunpack.c.3.s8 %v468
    %v591 = vunpack.c.3.s8 %v469
    %v592 = vunpack.c.0.s8 %v470
    %v593 = vunpack.c.0.s8 %v471
    %v594 = vunpack.c.1.s8 %v470
    %v595 = vunpack.c.1.s8 %v471
    %v596 = vunpack.c.2.s8 %v470
    %v597 = vunpack.c.2.s8 %v471
    %v598 = vunpack.c.3.s8 %v470
    %v599 = vunpack.c.3.s8 %v471
    %v600 = vcvt.s32.f32 %v472
    %v601 = vcvt.s32.f32 %v473
    %v602 = vcvt.s32.f32 %v474
    %v603 = vcvt.s32.f32 %v475
    %v604 = vcvt.s32.f32 %v476
    %v605 = vcvt.s32.f32 %v477
    %v606 = vcvt.s32.f32 %v478
    %v607 = vcvt.s32.f32 %v479
    %v608 = vcvt.s32.f32 %v480
    %v609 = vcvt.s32.f32 %v481
    %v610 = vcvt.s32.f32 %v482
    %v611 = vcvt.s32.f32 %v483
    %v612 = vcvt.s32.f32 %v484
    %v613 = vcvt.s32.f32 %v485
    %v614 = vcvt.s32.f32 %v486
    %v615 = vcvt.s32.f32 %v487
    %v616 = vcvt.s32.f32 %v488
    %v617 = vcvt.s32.f32 %v489
    %v618 = vcvt.s32.f32 %v490
    %v619 = vcvt.s32.f32 %v491
    %v620 = vcvt.s32.f32 %v492
    %v621 = vcvt.s32.f32 %v493
    %v622 = vcvt.s32.f32 %v494
    %v623 = vcvt.s32.f32 %v495
    %v624 = vcvt.s32.f32 %v496
    %v625 = vcvt.s32.f32 %v497
    %v626 = vcvt.s32.f32 %v498
    %v627 = vcvt.s32.f32 %v499
    %v628 = vcvt.s32.f32 %v500
    %v629 = vcvt.s32.f32 %v501
    %v630 = vcvt.s32.f32 %v502
    %v631 = vcvt.s32.f32 %v503
    %v632 = vcvt.s32.f32 %v504
    %v633 = vcvt.s32.f32 %v505
    %v634 = vcvt.s32.f32 %v506
    %v635 = vcvt.s32.f32 %v507
    %v636 = vcvt.s32.f32 %v508
    %v637 = vcvt.s32.f32 %v509
    %v638 = vcvt.s32.f32 %v510
    %v639 = vcvt.s32.f32 %v511
    %v640 = vcvt.s32.f32 %v512
    %v641 = vcvt.s32.f32 %v513
    %v642 = vcvt.s32.f32 %v514
    %v643 = vcvt.s32.f32 %v515
    %v644 = vcvt.s32.f32 %v516
    %v645 = vcvt.s32.f32 %v517
    %v646 = vcvt.s32.f32 %v518
    %v647 = vcvt.s32.f32 %v519
    %v648 = vcvt.s32.f32 %v520
    %v649 = vcvt.s32.f32 %v521
    %v650 = vcvt.s32.f32 %v522
    %v651 = vcvt.s32.f32 %v523
    %v652 = vcvt.s32.f32 %v524
    %v653 = vcvt.s32.f32 %v525
    %v654 = vcvt.s32.f32 %v526
    %v655 = vcvt.s32.f32 %v527
    %v656 = vcvt.s32.f32 %v528
    %v657 = vcvt.s32.f32 %v529
    %v658 = vcvt.s32.f32 %v530
    %v659 = vcvt.s32.f32 %v531
    %v660 = vcvt.s32.f32 %v532
    %v661 = vcvt.s32.f32 %v533
    %v662 = vcvt.s32.f32 %v534
    %v663 = vcvt.s32.f32 %v535
    %v664 = vcvt.s32.f32 %v536
    %v665 = vcvt.s32.f32 %v537
    %v666 = vcvt.s32.f32 %v538
    %v667 = vcvt.s32.f32 %v539
    %v668 = vcvt.s32.f32 %v540
    %v669 = vcvt.s32.f32 %v541
    %v670 = vcvt.s32.f32 %v542
    %v671 = vcvt.s32.f32 %v543
    %v672 = vcvt.s32.f32 %v544
    %v673 = vcvt.s32.f32 %v545
    %v674 = vcvt.s32.f32 %v546
    %v675 = vcvt.s32.f32 %v547
    %v676 = vcvt.s32.f32 %v548
    %v677 = vcvt.s32.f32 %v549
    %v678 = vcvt.s32.f32 %v550
    %v679 = vcvt.s32.f32 %v551
    %v680 = vcvt.s32.f32 %v552
    %v681 = vcvt.s32.f32 %v553
    %v682 = vcvt.s32.f32 %v554
    %v683 = vcvt.s32.f32 %v555
    %v684 = vcvt.s32.f32 %v556
    %v685 = vcvt.s32.f32 %v557
    %v686 = vcvt.s32.f32 %v558
    %v687 = vcvt.s32.f32 %v559
    %v688 = vcvt.s32.f32 %v560
    %v689 = vcvt.s32.f32 %v561
    %v690 = vcvt.s32.f32 %v562
    %v691 = vcvt.s32.f32 %v563
    %v692 = vcvt.s32.f32 %v564
    %v693 = vcvt.s32.f32 %v565
    %v694 = vcvt.s32.f32 %v566
    %v695 = vcvt.s32.f32 %v567
    %v696 = vcvt.s32.f32 %v568
    %v697 = vcvt.s32.f32 %v569
    %v698 = vcvt.s32.f32 %v570
    %v699 = vcvt.s32.f32 %v571
    %v700 = vcvt.s32.f32 %v572
    %v701 = vcvt.s32.f32 %v573
    %v702 = vcvt.s32.f32 %v574
    %v703 = vcvt.s32.f32 %v575
    %v704 = vcvt.s32.f32 %v576
    %v705 = vcvt.s32.f32 %v577
    %v706 = vcvt.s32.f32 %v578
    %v707 = vcvt.s32.f32 %v579
    %v708 = vcvt.s32.f32 %v580
    %v709 = vcvt.s32.f32 %v581
    %v710 = vcvt.s32.f32 %v582
    %v711 = vcvt.s32.f32 %v583
    %v712 = vcvt.s32.f32 %v584
    %v713 = vcvt.s32.f32 %v585
    %v714 = vcvt.s32.f32 %v586
    %v715 = vcvt.s32.f32 %v587
    %v716 = vcvt.s32.f32 %v588
    %v717 = vcvt.s32.f32 %v589
    %v718 = vcvt.s32.f32 %v590
    %v719 = vcvt.s32.f32 %v591
    %v720 = vcvt.s32.f32 %v592
    %v721 = vcvt.s32.f32 %v593
    %v722 = vcvt.s32.f32 %v594
    %v723 = vcvt.s32.f32 %v595
    %v724 = vcvt.s32.f32 %v596
    %v725 = vcvt.s32.f32 %v597
    %v726 = vcvt.s32.f32 %v598
    %v727 = vcvt.s32.f32 %v599
    %v728 = vpack.c.bf16 %v602, %v600
    %v729 = vpack.c.bf16 %v603, %v601
    %v730 = vpack.c.bf16 %v606, %v604
    %v731 = vpack.c.bf16 %v607, %v605
    %v732 = vpack.c.bf16 %v610, %v608
    %v733 = vpack.c.bf16 %v611, %v609
    %v734 = vpack.c.bf16 %v614, %v612
    %v735 = vpack.c.bf16 %v615, %v613
    %v736 = vpack.c.bf16 %v618, %v616
    %v737 = vpack.c.bf16 %v619, %v617
    %v738 = vpack.c.bf16 %v622, %v620
    %v739 = vpack.c.bf16 %v623, %v621
    %v740 = vpack.c.bf16 %v626, %v624
    %v741 = vpack.c.bf16 %v627, %v625
    %v742 = vpack.c.bf16 %v630, %v628
    %v743 = vpack.c.bf16 %v631, %v629
    %v744 = vpack.c.bf16 %v634, %v632
    %v745 = vpack.c.bf16 %v635, %v633
    %v746 = vpack.c.bf16 %v638, %v636
    %v747 = vpack.c.bf16 %v639, %v637
    %v748 = vpack.c.bf16 %v642, %v640
    %v749 = vpack.c.bf16 %v643, %v641
    %v750 = vpack.c.bf16 %v646, %v644
    %v751 = vpack.c.bf16 %v647, %v645
    %v752 = vpack.c.bf16 %v650, %v648
    %v753 = vpack.c.bf16 %v651, %v649
    %v754 = vpack.c.bf16 %v654, %v652
    %v755 = vpack.c.bf16 %v655, %v653
    %v756 = vpack.c.bf16 %v658, %v656
    %v757 = vpack.c.bf16 %v659, %v657
    %v758 = vpack.c.bf16 %v662, %v660
    %v759 = vpack.c.bf16 %v663, %v661
    %v760 = vpack.c.bf16 %v666, %v664
    %v761 = vpack.c.bf16 %v667, %v665
    %v762 = vpack.c.bf16 %v670, %v668
    %v763 = vpack.c.bf16 %v671, %v669
    %v764 = vpack.c.bf16 %v674, %v672
    %v765 = vpack.c.bf16 %v675, %v673
    %v766 = vpack.c.bf16 %v678, %v676
    %v767 = vpack.c.bf16 %v679, %v677
    %v768 = vpack.c.bf16 %v682, %v680
    %v769 = vpack.c.bf16 %v683, %v681
    %v770 = vpack.c.bf16 %v686, %v684
    %v771 = vpack.c.bf16 %v687, %v685
    %v772 = vpack.c.bf16 %v690, %v688
    %v773 = vpack.c.bf16 %v691, %v689
    %v774 = vpack.c.bf16 %v694, %v692
    %v775 = vpack.c.bf16 %v695, %v693
    %v776 = vpack.c.bf16 %v698, %v696
    %v777 = vpack.c.bf16 %v699, %v697
    %v778 = vpack.c.bf16 %v702, %v700
    %v779 = vpack.c.bf16 %v703, %v701
    %v780 = vpack.c.bf16 %v706, %v704
    %v781 = vpack.c.bf16 %v707, %v705
    %v782 = vpack.c.bf16 %v710, %v708
    %v783 = vpack.c.bf16 %v711, %v709
    %v784 = vpack.c.bf16 %v714, %v712
    %v785 = vpack.c.bf16 %v715, %v713
    %v786 = vpack.c.bf16 %v718, %v716
    %v787 = vpack.c.bf16 %v719, %v717
    %v788 = vpack.c.bf16 %v722, %v720
    %v789 = vpack.c.bf16 %v723, %v721
    %v790 = vpack.c.bf16 %v726, %v724
    %v791 = vpack.c.bf16 %v727, %v725
    %v792 = vpack.c.bf16 %v436, %v436
    %v793 = vpack.c.bf16 %v437, %v437
    %v794 = vpack.c.bf16 %v438, %v438
    %v795 = vpack.c.bf16 %v439, %v439
    %796 = vmatpush.bf16.msra.mxu0 %v742
    %797 = vmatpush.bf16.msra.mxu0 %v740
    %798 = vmatpush.bf16.msra.mxu0 %v738
    %799 = vmatpush.bf16.msra.mxu0 %v736
    %800 = vmatpush.bf16.msra.mxu0 %v734
    %801 = vmatpush.bf16.msra.mxu0 %v732
    %802 = vmatpush.bf16.msra.mxu0 %v730
    %803 = vmatpush.bf16.msra.mxu0 %v728
    %804 = vmatmul.bf16.gmra.mxu0 %v792
    %v805 = vpop.f32.mrf.mxu0
    %v806 = vadd.f32 0.0, %v805
    %v807 = vpop.f32.mrf.mxu0
    %808 = vdwg.mxu0
    %809 = vmatpush.bf16.msra.mxu0 %v758
    %810 = vmatpush.bf16.msra.mxu0 %v756
    %811 = vmatpush.bf16.msra.mxu0 %v754
    %812 = vmatpush.bf16.msra.mxu0 %v752
    %813 = vmatpush.bf16.msra.mxu0 %v750
    %814 = vmatpush.bf16.msra.mxu0 %v748
    %815 = vmatpush.bf16.msra.mxu0 %v746
    %816 = vmatpush.bf16.msra.mxu0 %v744
    %817 = vmatmul.bf16.gmra.mxu0 %v793
    %v818 = vpop.f32.mrf.mxu0
    %v819 = vadd.f32 %v806, %v818
    %v820 = vpop.f32.mrf.mxu0
    %821 = vdwg.mxu0
    %822 = vmatpush.bf16.msra.mxu0 %v774
    %823 = vmatpush.bf16.msra.mxu0 %v772
    %824 = vmatpush.bf16.msra.mxu0 %v770
    %825 = vmatpush.bf16.msra.mxu0 %v768
    %826 = vmatpush.bf16.msra.mxu0 %v766
    %827 = vmatpush.bf16.msra.mxu0 %v764
    %828 = vmatpush.bf16.msra.mxu0 %v762
    %829 = vmatpush.bf16.msra.mxu0 %v760
    %830 = vmatmul.bf16.gmra.mxu0 %v794
    %v831 = vpop.f32.mrf.mxu0
    %v832 = vadd.f32 %v819, %v831
    %v833 = vpop.f32.mrf.mxu0
    %834 = vdwg.mxu0
    %835 = vmatpush.bf16.msra.mxu0 %v790
    %836 = vmatpush.bf16.msra.mxu0 %v788
    %837 = vmatpush.bf16.msra.mxu0 %v786
    %838 = vmatpush.bf16.msra.mxu0 %v784
    %839 = vmatpush.bf16.msra.mxu0 %v782
    %840 = vmatpush.bf16.msra.mxu0 %v780
    %841 = vmatpush.bf16.msra.mxu0 %v778
    %842 = vmatpush.bf16.msra.mxu0 %v776
    %843 = vmatmul.bf16.gmra.mxu0 %v795
    %v844 = vpop.f32.mrf.mxu0
    %v845 = vadd.f32 %v832, %v844
    %v846 = vpop.f32.mrf.mxu0
    %847 = vdwg.mxu0
    %848 = vmatpush.bf16.msra.mxu0 %v743
    %849 = vmatpush.bf16.msra.mxu0 %v741
    %850 = vmatpush.bf16.msra.mxu0 %v739
    %851 = vmatpush.bf16.msra.mxu0 %v737
    %852 = vmatpush.bf16.msra.mxu0 %v735
    %853 = vmatpush.bf16.msra.mxu0 %v733
    %854 = vmatpush.bf16.msra.mxu0 %v731
    %855 = vmatpush.bf16.msra.mxu0 %v729
    %856 = vmatmul.bf16.gmra.mxu0 %v792
    %v857 = vpop.f32.mrf.mxu0
    %v858 = vadd.f32 0.0, %v857
    %v859 = vpop.f32.mrf.mxu0
    %860 = vdwg.mxu0
    %861 = vmatpush.bf16.msra.mxu0 %v759
    %862 = vmatpush.bf16.msra.mxu0 %v757
    %863 = vmatpush.bf16.msra.mxu0 %v755
    %864 = vmatpush.bf16.msra.mxu0 %v753
    %865 = vmatpush.bf16.msra.mxu0 %v751
    %866 = vmatpush.bf16.msra.mxu0 %v749
    %867 = vmatpush.bf16.msra.mxu0 %v747
    %868 = vmatpush.bf16.msra.mxu0 %v745
    %869 = vmatmul.bf16.gmra.mxu0 %v793
    %v870 = vpop.f32.mrf.mxu0
    %v871 = vadd.f32 %v858, %v870
    %v872 = vpop.f32.mrf.mxu0
    %873 = vdwg.mxu0
    %874 = vmatpush.bf16.msra.mxu0 %v775
    %875 = vmatpush.bf16.msra.mxu0 %v773
    %876 = vmatpush.bf16.msra.mxu0 %v771
    %877 = vmatpush.bf16.msra.mxu0 %v769
    %878 = vmatpush.bf16.msra.mxu0 %v767
    %879 = vmatpush.bf16.msra.mxu0 %v765
    %880 = vmatpush.bf16.msra.mxu0 %v763
    %881 = vmatpush.bf16.msra.mxu0 %v761
    %882 = vmatmul.bf16.gmra.mxu0 %v794
    %v883 = vpop.f32.mrf.mxu0
    %v884 = vadd.f32 %v871, %v883
    %v885 = vpop.f32.mrf.mxu0
    %886 = vdwg.mxu0
    %887 = vmatpush.bf16.msra.mxu0 %v791
    %888 = vmatpush.bf16.msra.mxu0 %v789
    %889 = vmatpush.bf16.msra.mxu0 %v787
    %890 = vmatpush.bf16.msra.mxu0 %v785
    %891 = vmatpush.bf16.msra.mxu0 %v783
    %892 = vmatpush.bf16.msra.mxu0 %v781
    %893 = vmatpush.bf16.msra.mxu0 %v779
    %894 = vmatpush.bf16.msra.mxu0 %v777
    %895 = vmatmul.bf16.gmra.mxu0 %v795
    %v896 = vpop.f32.mrf.mxu0
    %v897 = vadd.f32 %v884, %v896
    %v898 = vpop.f32.mrf.mxu0
    %899 = vdwg.mxu0
    %v900 = vld [vmem:[%s5] sm:$0x3]
    %v901 = vld [vmem:[#allocation10] sm:$0x3]
    %v902 = vrot.slane %v845, 4
    %v903 = vadd.f32 %v845, %v902
    %v904 = vrot.slane %v903, 2
    %v905 = vadd.f32 %v903, %v904
    %v906 = vrot.slane %v905, 1
    %v907 = vadd.f32 %v905, %v906
    %v908 = vrot.slane %v897, 4
    %v909 = vadd.f32 %v897, %v908
    %v910 = vrot.slane %v909, 2
    %v911 = vadd.f32 %v909, %v910
    %v912 = vrot.slane %v911, 1
    %v913 = vadd.f32 %v911, %v912
    %v914 = vmul.f32 %v907, 0.125
    %v915 = vmul.f32 %v913, 0.125
    %v916 = vsub.f32 %v845, %v914
    %v917 = vsub.f32 %v897, %v915
    %v918 = vmul.f32 %v916, %v916
    %v919 = vmul.f32 %v917, %v917
    %v920 = vrot.slane %v918, 4
    %v921 = vadd.f32 %v918, %v920
    %v922 = vrot.slane %v921, 2
    %v923 = vadd.f32 %v921, %v922
    %v924 = vrot.slane %v923, 1
    %v925 = vadd.f32 %v923, %v924
    %v926 = vrot.slane %v919, 4
    %v927 = vadd.f32 %v919, %v926
    %v928 = vrot.slane %v927, 2
    %v929 = vadd.f32 %v927, %v928
    %v930 = vrot.slane %v929, 1
    %v931 = vadd.f32 %v929, %v930
    %v932 = vmul.f32 %v925, 0.125
    %v933 = vmul.f32 %v931, 0.125
    %v934 = vadd.f32 %v932, 1e-05
    %v935 = vadd.f32 %v933, 1e-05
    %v936 = vrsqrt.pop %v934
    %v937 = vmul.f32 %v936, %v934
    %v938 = vmul.f32 %v937, %v936
    %v939 = vmul.f32 0.5, %v938
    %v940 = vsub.f32 1.5, %v939
    %v941 = vmul.f32 %v936, %v940
    %vm942 = vweird.f32 %v934
    %vm943 = vweird.f32 %v936
    %vm944 = vmor %vm942, %vm943
    %v945 = vsel %vm944, %v936, %v941
    %v946 = vrsqrt.pop %v935
    %v947 = vmul.f32 %v946, %v935
    %v948 = vmul.f32 %v947, %v946
    %v949 = vmul.f32 0.5, %v948
    %v950 = vsub.f32 1.5, %v949
    %v951 = vmul.f32 %v946, %v950
    %vm952 = vweird.f32 %v935
    %vm953 = vweird.f32 %v946
    %vm954 = vmor %vm952, %vm953
    %v955 = vsel %vm954, %v946, %v951
    %v958 = vrot.slane %v955, 7
    %v959 = vsel %vm386, %v945, %v958
    %v961 = vmul.f32 %v900, %v959
    %v963 = vperm.slane %v961, 0
    %v964 = vperm.slane %v961, 1
    %v967 = vmul.f32 %v914, %v963
    %v968 = vmul.f32 %v915, %v964
    %v971 = vrot.slane %v968, 7
    %v972 = vsel %vm386, %v967, %v971
    %v974 = vsub.f32 %v901, %v972
    %v975 = vmul.f32 %v845, %v963
    %v976 = vmul.f32 %v897, %v964
    %v978 = vperm.slane %v974, 0
    %v979 = vperm.slane %v974, 1
    %v982 = vadd.f32 %v975, %v978
    %v983 = vadd.f32 %v976, %v979
    %v984 = vmax.f32 %v982, 0.0
    %v985 = vmax.f32 %v983, 0.0
    %v986 = vld [vmem:[%s7] sm:$0x3]
    %v988 = vperm.slane %v986, 0
    %v989 = vperm.slane %v986, 1
    %v992 = vmul.f32 %v984, %v988
    %v993 = vmul.f32 %v985, %v989
    %v994 = vadd.f32 %v992, %v993
    %995 = vadd.xlane.f32.xlu0 %v994
    %v996 = vpop.xlane.xlu0 %995
    %v997 = vld [vmem:[#allocation2] sm:$0x1]
    %v999 = vperm.slane %v997, 0
    %v1001 = vadd.f32 %v996, %v999
    %v1002 = vmul.f32 %v1001, 0.5
    %v1003 = vtanh.pop %v1002
    %v1004 = vmul.f32 %v1003, 0.5
    %v1005 = vadd.f32 %v1004, 0.5
    %vm1006 = vcmask 7168
    %1007 = vst.msk [vmem:[%s9] sm:$0xff] %vm1006, %v1005
    // Predicated region
    $region58: #{net_forward.1} parent=1 // pred_check
      _
    $region59: #{net_forward.1} parent=1 // pred_check_branch
      %1009 = sbr.rel (0) target = $region61
    $region60: #{net_forward.1} parent=1 // pred_region
      _
    $region61: #{net_forward.1} parent=1 // pred_fallthru
      _
    // Predicated region
    $region62: #{net_forward.1} parent=1 // pred_check
      _
    $region63: #{net_forward.1} parent=1 // pred_check_branch
      %1011 = sbr.rel (0) target = $region65
    $region64: #{net_forward.1} parent=1 // pred_region
      _
    $region65: #{net_forward.1} parent=1 // pred_fallthru
      _
    %1012 = vsyncpa [#allocation4], 1
    %1013 = vsyncpa [#allocation6], 1
    %1014 = vsyncpa [#allocation9], 1

</llo_original>
